<compile_context>
chip_gen: v6e
topology: v6e:2x2x1
jax: 0.10.0
libtpu: 0.0.40
codegen_flags: <defaults>
</compile_context>

<pallas_src>
import functools
import re

import jax
import jax.numpy as jnp
from jax.experimental import pallas as pl
from jax.experimental.pallas import tpu as pltpu


# Each of the 16 binary fuzzy-logic gates written in the basis {1, a, b, a*b}:
#   op_g(a, b) = c0 + c1*a + c2*b + c3*(a*b)
_GATE_BASIS = [
    # 1,    a,    b,    ab
    [0.0,  0.0,  0.0,  0.0],   # FALSE
    [0.0,  0.0,  0.0,  1.0],   # a AND b
    [0.0,  1.0,  0.0, -1.0],   # a AND NOT b
    [0.0,  1.0,  0.0,  0.0],   # a
    [0.0,  0.0,  1.0, -1.0],   # NOT a AND b
    [0.0,  0.0,  1.0,  0.0],   # b
    [0.0,  1.0,  1.0, -2.0],   # a XOR b
    [0.0,  1.0,  1.0, -1.0],   # a OR b
    [1.0, -1.0, -1.0,  1.0],   # NOR
    [1.0, -1.0, -1.0,  2.0],   # XNOR
    [1.0,  0.0, -1.0,  0.0],   # NOT b
    [1.0,  0.0, -1.0,  1.0],   # a OR NOT b
    [1.0, -1.0,  0.0,  0.0],   # NOT a
    [1.0, -1.0,  0.0,  1.0],   # NOT a OR b
    [1.0,  0.0,  0.0, -1.0],   # NAND
    [1.0,  0.0,  0.0,  0.0],   # TRUE
]

_LANE = 128


def _round_up(n, m):
    return ((n + m - 1) // m) * m


def _pad2d(x, rows, cols):
    return jnp.pad(x, ((0, rows - x.shape[0]), (0, cols - x.shape[1])))


def _tpu_generation():
    """Best-effort TPU generation from device_kind; defaults to 6 (bf16-VALU class)."""
    try:
        kind = jax.devices()[0].device_kind.lower()
        m = re.search(r"v(\d+)", kind)
        if m:
            return int(m.group(1))
    except Exception:
        pass
    return 6


def _dln_kernel(x_ref, thr_ref, slope_ref,
                lab1_ref, c1_ref,
                lab2_ref, c2_ref,
                heads_ref, out_ref, *, h0_pad, h1_pad):
    """Fused DLN forward for one batch tile. All operands are VMEM-resident."""
    x = x_ref[...]                                              # (TB, D_in) f32

    # --- ThresholdLayer: soft per-feature threshold comparison -------------
    h = jax.nn.sigmoid(slope_ref[...] * (x - thr_ref[...]))     # (TB, D_in) f32

    # --- LogicLayer: one fused (la||lb) matmul + soft 16-gate mixture -------
    def logic_layer(h_in, lab_ref, c_ref, width):
        mix_dtype = c_ref.dtype                                 # bf16 (v6e/v7x) or f32 (v5e)
        # bf16 operands, f32 MXU accumulation, then cast straight into the mixture dtype.
        ab = jnp.dot(h_in.astype(jnp.bfloat16), lab_ref[...],
                     preferred_element_type=jnp.float32).astype(mix_dtype)  # (TB, 2*width)
        a = ab[:, :width]                                       # lane-aligned split
        b = ab[:, width:]
        c = c_ref[...]                                          # (8, width), rows 4..7 zero
        # per-neuron gate mixture in FMA-friendly basis form:
        #   c0 + c1*a + c2*b + c3*a*b == c0 + b*c2 + a*(c1 + c3*b)
        return c[0:1, :] + b * c[2:3, :] + a * (c[1:2, :] + c[3:4, :] * b)

    h = logic_layer(h, lab1_ref, c1_ref, h0_pad)                # (TB, H0p)
    h = logic_layer(h, lab2_ref, c2_ref, h1_pad)                # (TB, H1p)

    # --- MultiHeadedSumLayer: pre-folded mean head weight, one matmul -------
    # Output block is unpadded (TB, out_dim): only the real columns hit HBM.
    out_ref[...] = jnp.dot(h.astype(jnp.bfloat16), heads_ref[...],
                           preferred_element_type=jnp.float32).astype(out_ref.dtype)


def prepare_params(params, *, tau_out=1.0, mixture_dtype=None):
    """Fold / pack the raw DLN parameters. Run once per weight set, not per forward."""
    if mixture_dtype is None:
        # bf16 VALU exists on v6e/v7x; keep the gate mixture in f32 on v5e and older.
        mixture_dtype = jnp.bfloat16 if _tpu_generation() >= 6 else jnp.float32

    basis = jnp.asarray(_GATE_BASIS, dtype=jnp.float32)         # (16, 4)

    thr, slope = params["threshold"], params["slope"]
    la1, lb1, g1 = params["link_a1"], params["link_b1"], params["gate1"]
    la2, lb2, g2 = params["link_a2"], params["link_b2"], params["gate2"]
    heads_w = params["heads"]

    D_in = la1.shape[0]
    H0, H1 = la1.shape[1], la2.shape[1]
    out_dim = heads_w.shape[-1]
    H0p = _round_up(H0, _LANE)
    H1p = _round_up(H1, _LANE)

    # Soft link distributions, fused la||lb, zero-padded to lane multiples, bf16.
    la1_p = _pad2d(jax.nn.softmax(la1, axis=0), D_in, H0p)
    lb1_p = _pad2d(jax.nn.softmax(lb1, axis=0), D_in, H0p)
    lab1 = jnp.concatenate([la1_p, lb1_p], axis=1).astype(jnp.bfloat16)   # (D_in, 2*H0p)
    # Gate coefficients in the {1,a,b,ab} basis, padded to 8 sublanes (rows 4..7 zero).
    c1 = _pad2d((jax.nn.softmax(g1, axis=-1) @ basis).T, 8, H0p).astype(mixture_dtype)

    la2_p = _pad2d(jax.nn.softmax(la2, axis=0), H0p, H1p)
    lb2_p = _pad2d(jax.nn.softmax(lb2, axis=0), H0p, H1p)
    lab2 = jnp.concatenate([la2_p, lb2_p], axis=1).astype(jnp.bfloat16)   # (H0p, 2*H1p)
    c2 = _pad2d((jax.nn.softmax(g2, axis=-1) @ basis).T, 8, H1p).astype(mixture_dtype)

    # Head-mean folding: mean_h (x @ sigmoid(W_h)) / tau == x @ (mean_h sigmoid(W_h) / tau)
    heads_eff = jnp.mean(jax.nn.sigmoid(heads_w), axis=0) / float(tau_out)  # (H1, out_dim)
    heads_eff = _pad2d(heads_eff, H1p, out_dim).astype(jnp.bfloat16)        # row-pad only

    return {
        "thr": thr, "slope": slope,
        "lab1": lab1, "c1": c1,
        "lab2": lab2, "c2": c2,
        "heads": heads_eff,
    }


def dln_apply(x, packed, *, batch_tile=None):
    """Run the fused Pallas kernel on pre-packed parameters."""
    B, D_in = x.shape
    thr, slope = packed["thr"], packed["slope"]
    lab1, c1 = packed["lab1"], packed["c1"]
    lab2, c2 = packed["lab2"], packed["c2"]
    heads = packed["heads"]
    H0p = lab1.shape[1] // 2
    H1p = lab2.shape[1] // 2
    out_dim = heads.shape[1]

    gen = _tpu_generation()

    # ---- Generation-aware batch tiling --------------------------------------
    if batch_tile is None:
        target_steps = 4 if gen >= 7 else 2     # v7x: 2 TCs x double-buffer
        max_tile = 512 if gen >= 7 else 1024    # VMEM: 64 MiB (v7x) vs 128 MiB (v5e/v6e)
        tile = _round_up(max(pl.cdiv(B, target_steps), 1), 8)
        batch_tile = min(max(tile, 64), max_tile, _round_up(B, 8))

    # Pad batch to a tile multiple: last grid step never touches undefined rows.
    B_pad = _round_up(B, batch_tile)
    x_p = x if B_pad == B else jnp.pad(x, ((0, B_pad - B), (0, 0)))
    grid = (B_pad // batch_tile,)

    def invariant(arr):
        nd = arr.ndim
        return pl.BlockSpec(arr.shape, lambda i, _nd=nd: (0,) * _nd)

    kernel = functools.partial(_dln_kernel, h0_pad=H0p, h1_pad=H1p)

    vmem_limit_bytes = (48 if gen >= 7 else 64) * 1024 * 1024

    out = pl.pallas_call(
        kernel,
        out_shape=jax.ShapeDtypeStruct((B_pad, out_dim), jnp.float32),
        grid_spec=pltpu.PrefetchScalarGridSpec(
            num_scalar_prefetch=0,
            grid=grid,
            in_specs=[
                pl.BlockSpec((batch_tile, D_in), lambda i: (i, 0)),   # x (batch-tiled)
                invariant(thr),                   # threshold
                invariant(slope),                 # slope
                invariant(lab1),                  # fused link probs, layer 1 (bf16)
                invariant(c1),                    # gate coeffs, layer 1
                invariant(lab2),                  # fused link probs, layer 2 (bf16)
                invariant(c2),                    # gate coeffs, layer 2
                invariant(heads),                 # folded multi-head sum weight (bf16)
            ],
            out_specs=pl.BlockSpec((batch_tile, out_dim), lambda i: (i, 0)),
        ),
        compiler_params=pltpu.CompilerParams(
            dimension_semantics=("parallel",),
            vmem_limit_bytes=vmem_limit_bytes,
        ),
    )(x_p, thr, slope, lab1, c1, lab2, c2, heads)

    return out if B_pad == B else out[:B]


def dln_forward(x, params, *, tau_out=1.0, batch_tile=None):
    """Convenience wrapper: pack params and run the kernel."""
    return dln_apply(x, prepare_params(params, tau_out=tau_out), batch_tile=batch_tile)


def dln_reference(x, params, *, tau_out=1.0):
    """Pure-JAX f32 reference matching the PyTorch forward (using_heads=True path)."""
    basis = jnp.asarray(_GATE_BASIS, dtype=jnp.float32)
    h = jax.nn.sigmoid(params["slope"] * (x - params["threshold"]))

    def logic(h_in, la, lb, g):
        a = h_in @ jax.nn.softmax(la, axis=0)
        b = h_in @ jax.nn.softmax(lb, axis=0)
        c = (jax.nn.softmax(g, axis=-1) @ basis).T      # (4, out)
        return c[0] + c[1] * a + c[2] * b + c[3] * (a * b)

    h = logic(h, params["link_a1"], params["link_b1"], params["gate1"])
    h = logic(h, params["link_a2"], params["link_b2"], params["gate2"])
    heads = jax.nn.sigmoid(params["heads"])             # (num_heads, H1, out)
    per_head = jnp.einsum("bh,nho->nbo", h, heads)
    return jnp.mean(per_head, axis=0) / float(tau_out)


if __name__ == "__main__":
    # Small config consistent with DLNConfig:
    #   input_dim=16, hidden_dims=[32, 32], output_dim=4, num_heads=2,
    #   th_slope_init=2.0, tau_out=1.0
    B, D_IN = 8, 16
    HIDDEN = [32, 32]
    OUT_DIM = 4
    NUM_HEADS = 2
    TH_SLOPE_INIT = 2.0
    TAU_OUT = 1.0

    key = jax.random.PRNGKey(0)
    keys = jax.random.split(key, 10)

    x = jax.random.normal(keys[0], (B, D_IN), dtype=jnp.float32)

    params = {
        "threshold": jax.random.normal(keys[1], (1, D_IN), dtype=jnp.float32),
        "slope": jnp.full((1, D_IN), TH_SLOPE_INIT, dtype=jnp.float32),
        "link_a1": jax.random.normal(keys[2], (D_IN, HIDDEN[0]), dtype=jnp.float32),
        "link_b1": jax.random.normal(keys[3], (D_IN, HIDDEN[0]), dtype=jnp.float32),
        "gate1": jax.random.normal(keys[4], (HIDDEN[0], 16), dtype=jnp.float32),
        "link_a2": jax.random.normal(keys[5], (HIDDEN[0], HIDDEN[1]), dtype=jnp.float32),
        "link_b2": jax.random.normal(keys[6], (HIDDEN[0], HIDDEN[1]), dtype=jnp.float32),
        "gate2": jax.random.normal(keys[7], (HIDDEN[1], 16), dtype=jnp.float32),
        "heads": jax.random.normal(keys[8], (NUM_HEADS, HIDDEN[1], OUT_DIM), dtype=jnp.float32),
    }

    # Parameter packing hoisted out of the forward call (done once per weight set).
    packed = prepare_params(params, tau_out=TAU_OUT)
    packed = jax.tree_util.tree_map(jax.block_until_ready, packed)

    out = dln_apply(x, packed)
    jax.block_until_ready(out)
    assert out.shape == (B, OUT_DIM)

    # Validate against the f32 reference (bf16 matmuls / mixture => scaled tolerance).
    ref = dln_reference(x, params, tau_out=TAU_OUT)
    max_err = float(jnp.max(jnp.abs(out - ref)))
    scale = max(1.0, float(jnp.max(jnp.abs(ref))))
    assert max_err < 5e-2 * scale, f"mismatch vs reference: max abs err = {max_err} (scale {scale})"

    print("KERNEL_OK")
</pallas_src>

<mosaic_0001>
module attributes {stable_mosaic.version = 11 : i64} {
  func.func @_dln_kernel(%arg0: i32, %arg1: memref<8x16xf32, #tpu.memory_space<vmem>>, %arg2: memref<1x16xf32, #tpu.memory_space<vmem>>, %arg3: memref<1x16xf32, #tpu.memory_space<vmem>>, %arg4: memref<16x256xbf16, #tpu.memory_space<vmem>>, %arg5: memref<8x128xbf16, #tpu.memory_space<vmem>>, %arg6: memref<128x256xbf16, #tpu.memory_space<vmem>>, %arg7: memref<8x128xbf16, #tpu.memory_space<vmem>>, %arg8: memref<128x4xbf16, #tpu.memory_space<vmem>>, %arg9: memref<8x4xf32, #tpu.memory_space<vmem>>) attributes {dimension_semantics = [#tpu.dimension_semantics<parallel>], iteration_bounds = array<i64: 1>, scalar_prefetch = 0 : i64, scratch_operands = 0 : i64, tpu.core_type = #tpu.core_type<tc>, window_params = [{transform_indices = @transform_0, window_bounds = array<i64: 8, 16>}, {pipeline_mode = #tpu.pipeline_mode<synchronous>, transform_indices = @transform_1, window_bounds = array<i64: 1, 16>}, {pipeline_mode = #tpu.pipeline_mode<synchronous>, transform_indices = @transform_2, window_bounds = array<i64: 1, 16>}, {pipeline_mode = #tpu.pipeline_mode<synchronous>, transform_indices = @transform_3, window_bounds = array<i64: 16, 256>}, {pipeline_mode = #tpu.pipeline_mode<synchronous>, transform_indices = @transform_4, window_bounds = array<i64: 8, 128>}, {pipeline_mode = #tpu.pipeline_mode<synchronous>, transform_indices = @transform_5, window_bounds = array<i64: 128, 256>}, {pipeline_mode = #tpu.pipeline_mode<synchronous>, transform_indices = @transform_6, window_bounds = array<i64: 8, 128>}, {pipeline_mode = #tpu.pipeline_mode<synchronous>, transform_indices = @transform_7, window_bounds = array<i64: 128, 4>}, {transform_indices = @transform_8, window_bounds = array<i64: 8, 4>}]} {
    %c0 = arith.constant 0 : index
    %c0_0 = arith.constant 0 : index
    %0 = vector.load %arg1[%c0, %c0_0] : memref<8x16xf32, #tpu.memory_space<vmem>>, vector<8x16xf32>
    %c0_1 = arith.constant 0 : index
    %c0_2 = arith.constant 0 : index
    %1 = vector.load %arg3[%c0_1, %c0_2] : memref<1x16xf32, #tpu.memory_space<vmem>>, vector<1x16xf32>
    %c0_3 = arith.constant 0 : index
    %c0_4 = arith.constant 0 : index
    %2 = vector.load %arg2[%c0_3, %c0_4] : memref<1x16xf32, #tpu.memory_space<vmem>>, vector<1x16xf32>
    %3 = vector.broadcast %2 : vector<1x16xf32> to vector<8x16xf32>
    %4 = arith.subf %0, %3 : vector<8x16xf32>
    %5 = vector.broadcast %1 : vector<1x16xf32> to vector<8x16xf32>
    %6 = arith.mulf %5, %4 : vector<8x16xf32>
    %7 = arith.negf %6 : vector<8x16xf32>
    %8 = math.exp %7 : vector<8x16xf32>
    %cst = arith.constant 1.000000e+00 : f32
    %9 = vector.broadcast %cst : f32 to vector<8x16xf32>
    %10 = arith.addf %9, %8 : vector<8x16xf32>
    %11 = arith.divf %9, %10 : vector<8x16xf32>
    %12 = arith.truncf %11 : vector<8x16xf32> to vector<8x16xbf16>
    %c0_5 = arith.constant 0 : index
    %c0_6 = arith.constant 0 : index
    %13 = vector.load %arg4[%c0_5, %c0_6] : memref<16x256xbf16, #tpu.memory_space<vmem>>, vector<16x256xbf16>
    %cst_7 = arith.constant dense<0.000000e+00> : vector<8x256xf32>
    %14 = tpu.matmul %12, %13, %cst_7 {dimension_numbers = #tpu.dot_dimension_numbers<[1], [0], [0], [1], [0, 0, 1, 1], [], []>} : vector<8x16xbf16>, vector<16x256xbf16>, vector<8x256xf32> -> vector<8x256xf32>
    %15 = arith.truncf %14 : vector<8x256xf32> to vector<8x256xbf16>
    %16 = vector.extract_strided_slice %15 {offsets = [0, 0], sizes = [8, 128], strides = [1, 1]} : vector<8x256xbf16> to vector<8x128xbf16>
    %17 = vector.extract_strided_slice %15 {offsets = [0, 128], sizes = [8, 128], strides = [1, 1]} : vector<8x256xbf16> to vector<8x128xbf16>
    %c0_8 = arith.constant 0 : index
    %c0_9 = arith.constant 0 : index
    %18 = vector.load %arg5[%c0_8, %c0_9] : memref<8x128xbf16, #tpu.memory_space<vmem>>, vector<8x128xbf16>
    %19 = vector.extract_strided_slice %18 {offsets = [0, 0], sizes = [1, 128], strides = [1, 1]} : vector<8x128xbf16> to vector<1x128xbf16>
    %20 = vector.extract_strided_slice %18 {offsets = [2, 0], sizes = [1, 128], strides = [1, 1]} : vector<8x128xbf16> to vector<1x128xbf16>
    %21 = vector.broadcast %20 : vector<1x128xbf16> to vector<8x128xbf16>
    %22 = arith.mulf %17, %21 : vector<8x128xbf16>
    %23 = vector.broadcast %19 : vector<1x128xbf16> to vector<8x128xbf16>
    %24 = arith.addf %23, %22 : vector<8x128xbf16>
    %25 = vector.extract_strided_slice %18 {offsets = [1, 0], sizes = [1, 128], strides = [1, 1]} : vector<8x128xbf16> to vector<1x128xbf16>
    %26 = vector.extract_strided_slice %18 {offsets = [3, 0], sizes = [1, 128], strides = [1, 1]} : vector<8x128xbf16> to vector<1x128xbf16>
    %27 = vector.broadcast %26 : vector<1x128xbf16> to vector<8x128xbf16>
    %28 = arith.mulf %27, %17 : vector<8x128xbf16>
    %29 = vector.broadcast %25 : vector<1x128xbf16> to vector<8x128xbf16>
    %30 = arith.addf %29, %28 : vector<8x128xbf16>
    %31 = arith.mulf %16, %30 : vector<8x128xbf16>
    %32 = arith.addf %24, %31 : vector<8x128xbf16>
    %c0_10 = arith.constant 0 : index
    %c0_11 = arith.constant 0 : index
    %33 = vector.load %arg6[%c0_10, %c0_11] : memref<128x256xbf16, #tpu.memory_space<vmem>>, vector<128x256xbf16>
    %cst_12 = arith.constant dense<0.000000e+00> : vector<8x256xf32>
    %34 = tpu.matmul %32, %33, %cst_12 {dimension_numbers = #tpu.dot_dimension_numbers<[1], [0], [0], [1], [0, 0, 1, 1], [], []>} : vector<8x128xbf16>, vector<128x256xbf16>, vector<8x256xf32> -> vector<8x256xf32>
    %35 = arith.truncf %34 : vector<8x256xf32> to vector<8x256xbf16>
    %36 = vector.extract_strided_slice %35 {offsets = [0, 0], sizes = [8, 128], strides = [1, 1]} : vector<8x256xbf16> to vector<8x128xbf16>
    %37 = vector.extract_strided_slice %35 {offsets = [0, 128], sizes = [8, 128], strides = [1, 1]} : vector<8x256xbf16> to vector<8x128xbf16>
    %c0_13 = arith.constant 0 : index
    %c0_14 = arith.constant 0 : index
    %38 = vector.load %arg7[%c0_13, %c0_14] : memref<8x128xbf16, #tpu.memory_space<vmem>>, vector<8x128xbf16>
    %39 = vector.extract_strided_slice %38 {offsets = [0, 0], sizes = [1, 128], strides = [1, 1]} : vector<8x128xbf16> to vector<1x128xbf16>
    %40 = vector.extract_strided_slice %38 {offsets = [2, 0], sizes = [1, 128], strides = [1, 1]} : vector<8x128xbf16> to vector<1x128xbf16>
    %41 = vector.broadcast %40 : vector<1x128xbf16> to vector<8x128xbf16>
    %42 = arith.mulf %37, %41 : vector<8x128xbf16>
    %43 = vector.broadcast %39 : vector<1x128xbf16> to vector<8x128xbf16>
    %44 = arith.addf %43, %42 : vector<8x128xbf16>
    %45 = vector.extract_strided_slice %38 {offsets = [1, 0], sizes = [1, 128], strides = [1, 1]} : vector<8x128xbf16> to vector<1x128xbf16>
    %46 = vector.extract_strided_slice %38 {offsets = [3, 0], sizes = [1, 128], strides = [1, 1]} : vector<8x128xbf16> to vector<1x128xbf16>
    %47 = vector.broadcast %46 : vector<1x128xbf16> to vector<8x128xbf16>
    %48 = arith.mulf %47, %37 : vector<8x128xbf16>
    %49 = vector.broadcast %45 : vector<1x128xbf16> to vector<8x128xbf16>
    %50 = arith.addf %49, %48 : vector<8x128xbf16>
    %51 = arith.mulf %36, %50 : vector<8x128xbf16>
    %52 = arith.addf %44, %51 : vector<8x128xbf16>
    %c0_15 = arith.constant 0 : index
    %c0_16 = arith.constant 0 : index
    %53 = vector.load %arg8[%c0_15, %c0_16] : memref<128x4xbf16, #tpu.memory_space<vmem>>, vector<128x4xbf16>
    %cst_17 = arith.constant dense<0.000000e+00> : vector<8x4xf32>
    %54 = tpu.matmul %52, %53, %cst_17 {dimension_numbers = #tpu.dot_dimension_numbers<[1], [0], [0], [1], [0, 0, 1, 1], [], []>} : vector<8x128xbf16>, vector<128x4xbf16>, vector<8x4xf32> -> vector<8x4xf32>
    %c0_18 = arith.constant 0 : index
    %c0_19 = arith.constant 0 : index
    %55 = vector.load %arg9[%c0_18, %c0_19] : memref<8x4xf32, #tpu.memory_space<vmem>>, vector<8x4xf32>
    tpu.vector_store %arg9[%c0_18, %c0_19], %54 {strides = array<i32>} : memref<8x4xf32, #tpu.memory_space<vmem>>, vector<8x4xf32>,
    return
  }
  func.func @transform_0(%arg0: i32) -> (i32, i32) {
    %c0_i32 = arith.constant 0 : i32
    %c0_i32_0 = arith.constant 0 : i32
    return %arg0, %c0_i32 : i32, i32
  }
  func.func @transform_1(%arg0: i32) -> (i32, i32) {
    %c0_i32 = arith.constant 0 : i32
    %c0_i32_0 = arith.constant 0 : i32
    %c0_i32_1 = arith.constant 0 : i32
    return %c0_i32, %c0_i32_0 : i32, i32
  }
  func.func @transform_2(%arg0: i32) -> (i32, i32) {
    %c0_i32 = arith.constant 0 : i32
    %c0_i32_0 = arith.constant 0 : i32
    %c0_i32_1 = arith.constant 0 : i32
    return %c0_i32, %c0_i32_0 : i32, i32
  }
  func.func @transform_3(%arg0: i32) -> (i32, i32) {
    %c0_i32 = arith.constant 0 : i32
    %c0_i32_0 = arith.constant 0 : i32
    %c0_i32_1 = arith.constant 0 : i32
    return %c0_i32, %c0_i32_0 : i32, i32
  }
  func.func @transform_4(%arg0: i32) -> (i32, i32) {
    %c0_i32 = arith.constant 0 : i32
    %c0_i32_0 = arith.constant 0 : i32
    %c0_i32_1 = arith.constant 0 : i32
    return %c0_i32, %c0_i32_0 : i32, i32
  }
  func.func @transform_5(%arg0: i32) -> (i32, i32) {
    %c0_i32 = arith.constant 0 : i32
    %c0_i32_0 = arith.constant 0 : i32
    %c0_i32_1 = arith.constant 0 : i32
    return %c0_i32, %c0_i32_0 : i32, i32
  }
  func.func @transform_6(%arg0: i32) -> (i32, i32) {
    %c0_i32 = arith.constant 0 : i32
    %c0_i32_0 = arith.constant 0 : i32
    %c0_i32_1 = arith.constant 0 : i32
    return %c0_i32, %c0_i32_0 : i32, i32
  }
  func.func @transform_7(%arg0: i32) -> (i32, i32) {
    %c0_i32 = arith.constant 0 : i32
    %c0_i32_0 = arith.constant 0 : i32
    %c0_i32_1 = arith.constant 0 : i32
    return %c0_i32, %c0_i32_0 : i32, i32
  }
  func.func @transform_8(%arg0: i32) -> (i32, i32) {
    %c0_i32 = arith.constant 0 : i32
    %c0_i32_0 = arith.constant 0 : i32
    return %arg0, %c0_i32 : i32, i32
  }
}

</mosaic_0001>

<llo_original>
// kernel: tpu_custom_call.1
$region0: #{tpu_custom_call.1}
  #allocation0 [shape = 'u32[]', space=smem, size = 0x4, offset = 0x4, fixed_abs, tag = 'smem constant byte address 0x4 - core index']
  #allocation1 [shape = 'u32[144,128]{1,0:T(1,128)}', space=vmem, size = 0x12000, scoped, tag = 'internal scratch']
  %s0 = inlined_call_operand.vmem [shape: f32[8,16], index: 0, kind: input, shape index: {}]
  %s1 = inlined_call_operand.vmem [shape: f32[1,16], index: 1, kind: input, shape index: {}]
  %s2 = inlined_call_operand.vmem [shape: f32[1,16], index: 2, kind: input, shape index: {}]
  %s3 = inlined_call_operand.vmem [shape: bf16[16,256], index: 3, kind: input, shape index: {}]
  %s4 = inlined_call_operand.vmem [shape: bf16[8,128], index: 4, kind: input, shape index: {}]
  %s5 = inlined_call_operand.hbm [shape: bf16[128,256], index: 5, kind: input, shape index: {}]
  %s6 = inlined_call_operand.vmem [shape: bf16[8,128], index: 6, kind: input, shape index: {}]
  %s7 = inlined_call_operand.vmem [shape: bf16[128,4], index: 7, kind: input, shape index: {}]
  %s8 = inlined_call_operand.vmem [shape: f32[8,4], index: 8, kind: output, shape index: {}]
  %s9 = sld [smem:[#allocation0]]
  $region46: #{tpu_custom_call.1} parent=0
    _
  %s11 = ssub.s32 1, %s9
  %s12 = scalar_select 0, %s11, %s9
  $region1: #{tpu_custom_call.1} parent=0
    #allocation2 [shape = 'u8[65536]{0}', space=vmem, size = 0x10000, scoped, tag = 'input window, operand 5, single buffered']
    #allocation3 [shape = 's32[1]{0}', space=sflag, size = 0x4, scoped, tag = 'scoped memory for tpu_custom_call.1']
    %13 = vsyncpa [#allocation3], 0
    // Predicated region
    $region2: #{tpu_custom_call.1} parent=1 // pred_check
      _
    $region3: #{tpu_custom_call.1} parent=1 // pred_check_branch
      %15 = sbr.rel (0) target = $region5
    $region4: #{tpu_custom_call.1} parent=1 // pred_region
      _
    $region5: #{tpu_custom_call.1} parent=1 // pred_fallthru
      _
    // Predicated region
    $region6: #{tpu_custom_call.1} parent=1 // pred_check
      _
    $region7: #{tpu_custom_call.1} parent=1 // pred_check_branch
      %17 = sbr.rel (0) target = $region9
    $region8: #{tpu_custom_call.1} parent=1 // pred_region
      _
    $region9: #{tpu_custom_call.1} parent=1 // pred_fallthru
      _
    // Predicated region
    $region10: #{tpu_custom_call.1} parent=1 // pred_check
      _
    $region11: #{tpu_custom_call.1} parent=1 // pred_check_branch
      %19 = sbr.rel (0) target = $region13
    $region12: #{tpu_custom_call.1} parent=1 // pred_region
      _
    $region13: #{tpu_custom_call.1} parent=1 // pred_fallthru
      _
    // Predicated region
    $region14: #{tpu_custom_call.1} parent=1 // pred_check
      _
    $region15: #{tpu_custom_call.1} parent=1 // pred_check_branch
      %21 = sbr.rel (0) target = $region17
    $region16: #{tpu_custom_call.1} parent=1 // pred_region
      _
    $region17: #{tpu_custom_call.1} parent=1 // pred_fallthru
      _
    // Predicated region
    $region18: #{tpu_custom_call.1} parent=1 // pred_check
      _
    $region19: #{tpu_custom_call.1} parent=1 // pred_check_branch
      %23 = sbr.rel (0) target = $region21
    $region20: #{tpu_custom_call.1} parent=1 // pred_region
      _
    $region21: #{tpu_custom_call.1} parent=1 // pred_fallthru
      _
    // Predicated region
    $region22: #{tpu_custom_call.1} parent=1 // pred_check
      _
    $region23: #{tpu_custom_call.1} parent=1 // pred_check_branch
      %25 = sbr.rel (0) target = $region25
    $region24: #{tpu_custom_call.1} parent=1 // pred_region
      %s27 = ssub.s32 2048, 2048
      %28 = vsyncadd [#allocation3], %s27
      %s29 = sshll.u32 [#allocation2], 4
      %s30 = int_to_ptr.vmem [resolvable:$true] %s29
      %35 = dma.hbm_to_vmem [thread:$0]  %s5, 2048, %s30, [#allocation3], 128, 128, 8
    $region25: #{tpu_custom_call.1} parent=1 // pred_fallthru
      _
    // Predicated region
    $region26: #{tpu_custom_call.1} parent=1 // pred_check
      _
    $region27: #{tpu_custom_call.1} parent=1 // pred_check_branch
      %37 = sbr.rel (0) target = $region29
    $region28: #{tpu_custom_call.1} parent=1 // pred_region
      _
    $region29: #{tpu_custom_call.1} parent=1 // pred_fallthru
      _
    // Predicated region
    $region30: #{tpu_custom_call.1} parent=1 // pred_check
      _
    $region31: #{tpu_custom_call.1} parent=1 // pred_check_branch
      %39 = sbr.rel (0) target = $region33
    $region32: #{tpu_custom_call.1} parent=1 // pred_region
      _
    $region33: #{tpu_custom_call.1} parent=1 // pred_fallthru
      _
    // Predicated region
    $region34: #{tpu_custom_call.1} parent=1 // pred_check
      _
    $region35: #{tpu_custom_call.1} parent=1 // pred_check_branch
      %41 = sbr.rel (0) target = $region37
    $region36: #{tpu_custom_call.1} parent=1 // pred_region
      %42 = dma.done [#allocation3], 2048
    $region37: #{tpu_custom_call.1} parent=1 // pred_fallthru
      _
    %v44 = vld [vmem:[%s0] sm:$0xff]
    %v45 = vld [vmem:[%s2] sm:$0x1]
    %v46 = vld [vmem:[%s1] sm:$0x1]
    %v48 = vlaneseq
    %v49 = vshrl.u32 %v48, 7
    %v50 = vsub.s32 0, %v49
    %v51 = vrot.slane %v46, %v50
    %v53 = vsub.f32 %v44, %v51
    %v55 = vlaneseq
    %v56 = vshrl.u32 %v55, 7
    %v57 = vsub.s32 0, %v56
    %v58 = vrot.slane %v45, %v57
    %v60 = vmul.f32 %v58, %v53
    %v61 = vxor.u32 %v60, 2147483648
    %v62 = vmul.f32 %v61, 1.442695
    %v63 = vpow.pop %v62
    %v64 = vadd.f32 %v63, 1.0
    %v65 = vrcp.pop %v64
    %v66 = vmul.f32 1.0, %v65
    %v67 = vpack.c.bf16 %v66, %v66
    %v68 = vld [vmem:[%s3] sm:$0xff]
    %v69 = vld [vmem:[%s3 + $0x8] sm:$0xff]
    %v72 = vunpack.c.l.b16 %v68
    %v73 = vunpack.c.h.b16 %v68
    %v74 = vunpack.c.l.b16 %v69
    %v75 = vunpack.c.h.b16 %v69
    %v76 = vpack.c.b16 %v74, %v72
    %v77 = vpack.c.b16 %v75, %v73
    %vm80 = vcmask 130048
    %v82 = vsel %vm80, %v67, 0
    %84 = vmatprep.subr.bf16.mxu0 0
    %85 = vmatpush1.bf16.msra.mxu0 0
    %86 = vmatprep.subr.bf16.mxu0 0
    %87 = vmatpush1.bf16.msra.mxu0 0
    %88 = vmatprep.subr.bf16.mxu0 0
    %89 = vmatpush1.bf16.msra.mxu0 0
    %90 = vmatprep.subr.bf16.mxu0 0
    %91 = vmatpush1.bf16.msra.mxu0 0
    %92 = vmatprep.subr.bf16.mxu0 0
    %93 = vmatpush1.bf16.msra.mxu0 0
    %94 = vmatprep.subr.bf16.mxu0 0
    %95 = vmatpush1.bf16.msra.mxu0 0
    %96 = vmatprep.subr.bf16.mxu0 0
    %97 = vmatpush1.bf16.msra.mxu0 0
    %98 = vmatprep.subr.bf16.mxu0 %v77
    %99 = vmatpush1.bf16.msra.mxu0 %v76
    %100 = vmatprep.subr.bf16.mxu0 0
    %101 = vmatpush2.bf16.msra.mxu0 0
    %102 = vmatprep.subr.bf16.mxu0 0
    %103 = vmatpush2.bf16.msra.mxu0 0
    %104 = vmatprep.subr.bf16.mxu0 0
    %105 = vmatpush2.bf16.msra.mxu0 0
    %106 = vmatprep.subr.bf16.mxu0 0
    %107 = vmatpush2.bf16.msra.mxu0 0
    %108 = vmatprep.subr.bf16.mxu0 0
    %109 = vmatpush2.bf16.msra.mxu0 0
    %110 = vmatprep.subr.bf16.mxu0 0
    %111 = vmatpush2.bf16.msra.mxu0 0
    %112 = vmatprep.subr.bf16.mxu0 0
    %113 = vmatpush2.bf16.msra.mxu0 0
    %114 = vmatprep.subr.bf16.mxu0 0
    %115 = vmatpush2.bf16.msra.mxu0 0
    %116 = vmatprep.mubr.bf16.mxu0 0
    %117 = vmatmul.mubr.bf16.gmra.mxu0 %v82
    %v118 = vpop.f32.mrf.mxu0
    %v119 = vadd.f32 0.0, %v118
    %v120 = vpop.f32.mrf.mxu0
    %v121 = vadd.f32 0.0, %v120
    %v122 = vpop.f32.mrf.mxu0
    %v123 = vpop.f32.mrf.mxu0
    %124 = vdwg.mxu0
    %v125 = vpack.c.bf16 %v119, %v119
    %v126 = vpack.c.bf16 %v121, %v121
    %v127 = vld [vmem:[%s4] sm:$0xf]
    %v129 = vpack.i.b16 %v127, %v127
    %v131 = vlaneseq
    %v132 = vshrl.u32 %v131, 7
    %v133 = vsub.s32 1, %v132
    %v134 = vrot.slane %v129, %v133
    %v135 = vmul.bf16 %v126, %v134
    %v136 = vlaneseq
    %v137 = vshrl.u32 %v136, 7
    %v138 = vsub.s32 0, %v137
    %v139 = vrot.slane %v129, %v138
    %v140 = vadd.bf16 %v139, %v135
    %v141 = vshrl.u32 %v127, 16
    %v142 = vpack.i.b16 %v141, %v141
    %v144 = vlaneseq
    %v145 = vshrl.u32 %v144, 7
    %v146 = vsub.s32 1, %v145
    %v147 = vrot.slane %v142, %v146
    %v148 = vmul.bf16 %v147, %v126
    %v149 = vlaneseq
    %v150 = vshrl.u32 %v149, 7
    %v151 = vsub.s32 0, %v150
    %v152 = vrot.slane %v142, %v151
    %v153 = vadd.bf16 %v152, %v148
    %v154 = vmul.bf16 %v125, %v153
    %v155 = vadd.bf16 %v140, %v154
    %v156 = vld [vmem:[#allocation2] sm:$0xff]
    %v157 = vld [vmem:[#allocation2 + $0x8] sm:$0xff]
    %v158 = vld [vmem:[#allocation2 + $0x10] sm:$0xff]
    %v159 = vld [vmem:[#allocation2 + $0x18] sm:$0xff]
    %v160 = vld [vmem:[#allocation2 + $0x20] sm:$0xff]
    %v161 = vld [vmem:[#allocation2 + $0x28] sm:$0xff]
    %v162 = vld [vmem:[#allocation2 + $0x30] sm:$0xff]
    %v163 = vld [vmem:[#allocation2 + $0x38] sm:$0xff]
    %v164 = vld [vmem:[#allocation2 + $0x40] sm:$0xff]
    %v165 = vld [vmem:[#allocation2 + $0x48] sm:$0xff]
    %v166 = vld [vmem:[#allocation2 + $0x50] sm:$0xff]
    %v167 = vld [vmem:[#allocation2 + $0x58] sm:$0xff]
    %v168 = vld [vmem:[#allocation2 + $0x60] sm:$0xff]
    %v169 = vld [vmem:[#allocation2 + $0x68] sm:$0xff]
    %v170 = vld [vmem:[#allocation2 + $0x70] sm:$0xff]
    %v171 = vld [vmem:[#allocation2 + $0x78] sm:$0xff]
    %v188 = vunpack.c.l.b16 %v156
    %v189 = vunpack.c.h.b16 %v156
    %v190 = vunpack.c.l.b16 %v157
    %v191 = vunpack.c.h.b16 %v157
    %v192 = vunpack.c.l.b16 %v158
    %v193 = vunpack.c.h.b16 %v158
    %v194 = vunpack.c.l.b16 %v159
    %v195 = vunpack.c.h.b16 %v159
    %v196 = vunpack.c.l.b16 %v160
    %v197 = vunpack.c.h.b16 %v160
    %v198 = vunpack.c.l.b16 %v161
    %v199 = vunpack.c.h.b16 %v161
    %v200 = vunpack.c.l.b16 %v162
    %v201 = vunpack.c.h.b16 %v162
    %v202 = vunpack.c.l.b16 %v163
    %v203 = vunpack.c.h.b16 %v163
    %v204 = vunpack.c.l.b16 %v164
    %v205 = vunpack.c.h.b16 %v164
    %v206 = vunpack.c.l.b16 %v165
    %v207 = vunpack.c.h.b16 %v165
    %v208 = vunpack.c.l.b16 %v166
    %v209 = vunpack.c.h.b16 %v166
    %v210 = vunpack.c.l.b16 %v167
    %v211 = vunpack.c.h.b16 %v167
    %v212 = vunpack.c.l.b16 %v168
    %v213 = vunpack.c.h.b16 %v168
    %v214 = vunpack.c.l.b16 %v169
    %v215 = vunpack.c.h.b16 %v169
    %v216 = vunpack.c.l.b16 %v170
    %v217 = vunpack.c.h.b16 %v170
    %v218 = vunpack.c.l.b16 %v171
    %v219 = vunpack.c.h.b16 %v171
    %v220 = vpack.c.b16 %v190, %v188
    %v221 = vpack.c.b16 %v191, %v189
    %v222 = vpack.c.b16 %v194, %v192
    %v223 = vpack.c.b16 %v195, %v193
    %v224 = vpack.c.b16 %v198, %v196
    %v225 = vpack.c.b16 %v199, %v197
    %v226 = vpack.c.b16 %v202, %v200
    %v227 = vpack.c.b16 %v203, %v201
    %v228 = vpack.c.b16 %v206, %v204
    %v229 = vpack.c.b16 %v207, %v205
    %v230 = vpack.c.b16 %v210, %v208
    %v231 = vpack.c.b16 %v211, %v209
    %v232 = vpack.c.b16 %v214, %v212
    %v233 = vpack.c.b16 %v215, %v213
    %v234 = vpack.c.b16 %v218, %v216
    %v235 = vpack.c.b16 %v219, %v217
    %252 = vmatprep.subr.bf16.mxu0 %v235
    %253 = vmatpush1.bf16.msra.mxu0 %v234
    %254 = vmatprep.subr.bf16.mxu0 %v233
    %255 = vmatpush1.bf16.msra.mxu0 %v232
    %256 = vmatprep.subr.bf16.mxu0 %v231
    %257 = vmatpush1.bf16.msra.mxu0 %v230
    %258 = vmatprep.subr.bf16.mxu0 %v229
    %259 = vmatpush1.bf16.msra.mxu0 %v228
    %260 = vmatprep.subr.bf16.mxu0 %v227
    %261 = vmatpush1.bf16.msra.mxu0 %v226
    %262 = vmatprep.subr.bf16.mxu0 %v225
    %263 = vmatpush1.bf16.msra.mxu0 %v224
    %264 = vmatprep.subr.bf16.mxu0 %v223
    %265 = vmatpush1.bf16.msra.mxu0 %v222
    %266 = vmatprep.subr.bf16.mxu0 %v221
    %267 = vmatpush1.bf16.msra.mxu0 %v220
    %268 = vmatprep.subr.bf16.mxu0 0
    %269 = vmatpush2.bf16.msra.mxu0 0
    %270 = vmatprep.subr.bf16.mxu0 0
    %271 = vmatpush2.bf16.msra.mxu0 0
    %272 = vmatprep.subr.bf16.mxu0 0
    %273 = vmatpush2.bf16.msra.mxu0 0
    %274 = vmatprep.subr.bf16.mxu0 0
    %275 = vmatpush2.bf16.msra.mxu0 0
    %276 = vmatprep.subr.bf16.mxu0 0
    %277 = vmatpush2.bf16.msra.mxu0 0
    %278 = vmatprep.subr.bf16.mxu0 0
    %279 = vmatpush2.bf16.msra.mxu0 0
    %280 = vmatprep.subr.bf16.mxu0 0
    %281 = vmatpush2.bf16.msra.mxu0 0
    %282 = vmatprep.subr.bf16.mxu0 0
    %283 = vmatpush2.bf16.msra.mxu0 0
    %284 = vmatprep.mubr.bf16.mxu0 0
    %285 = vmatmul.mubr.bf16.gmra.mxu0 %v155
    %v286 = vpop.f32.mrf.mxu0
    %v287 = vadd.f32 0.0, %v286
    %v288 = vpop.f32.mrf.mxu0
    %v289 = vadd.f32 0.0, %v288
    %v290 = vpop.f32.mrf.mxu0
    %v291 = vpop.f32.mrf.mxu0
    %292 = vdwg.mxu0
    %v293 = vpack.c.bf16 %v287, %v287
    %v294 = vpack.c.bf16 %v289, %v289
    %v295 = vld [vmem:[%s6] sm:$0xf]
    %v297 = vpack.i.b16 %v295, %v295
    %v299 = vlaneseq
    %v300 = vshrl.u32 %v299, 7
    %v301 = vsub.s32 1, %v300
    %v302 = vrot.slane %v297, %v301
    %v303 = vmul.bf16 %v294, %v302
    %v304 = vlaneseq
    %v305 = vshrl.u32 %v304, 7
    %v306 = vsub.s32 0, %v305
    %v307 = vrot.slane %v297, %v306
    %v308 = vadd.bf16 %v307, %v303
    %v309 = vshrl.u32 %v295, 16
    %v310 = vpack.i.b16 %v309, %v309
    %v312 = vlaneseq
    %v313 = vshrl.u32 %v312, 7
    %v314 = vsub.s32 1, %v313
    %v315 = vrot.slane %v310, %v314
    %v316 = vmul.bf16 %v315, %v294
    %v317 = vlaneseq
    %v318 = vshrl.u32 %v317, 7
    %v319 = vsub.s32 0, %v318
    %v320 = vrot.slane %v310, %v319
    %v321 = vadd.bf16 %v320, %v316
    %v322 = vmul.bf16 %v293, %v321
    %v323 = vadd.bf16 %v308, %v322
    %v324 = vld [vmem:[%s7] sm:$0xf]
    %v325 = vld [vmem:[%s7 + $0x4] sm:$0xf]
    %v326 = vld [vmem:[%s7 + $0x8] sm:$0xf]
    %v327 = vld [vmem:[%s7 + $0xc] sm:$0xf]
    %v328 = vld [vmem:[%s7 + $0x10] sm:$0xf]
    %v329 = vld [vmem:[%s7 + $0x14] sm:$0xf]
    %v330 = vld [vmem:[%s7 + $0x18] sm:$0xf]
    %v331 = vld [vmem:[%s7 + $0x1c] sm:$0xf]
    %v332 = vld [vmem:[%s7 + $0x20] sm:$0xf]
    %v333 = vld [vmem:[%s7 + $0x24] sm:$0xf]
    %v334 = vld [vmem:[%s7 + $0x28] sm:$0xf]
    %v335 = vld [vmem:[%s7 + $0x2c] sm:$0xf]
    %v336 = vld [vmem:[%s7 + $0x30] sm:$0xf]
    %v337 = vld [vmem:[%s7 + $0x34] sm:$0xf]
    %v338 = vld [vmem:[%s7 + $0x38] sm:$0xf]
    %v339 = vld [vmem:[%s7 + $0x3c] sm:$0xf]
    %v356 = vunpack.c.l.b16 %v324
    %v357 = vunpack.c.l.b16 %v325
    %v358 = vunpack.c.l.b16 %v326
    %v359 = vunpack.c.l.b16 %v327
    %v360 = vunpack.c.l.b16 %v328
    %v361 = vunpack.c.l.b16 %v329
    %v362 = vunpack.c.l.b16 %v330
    %v363 = vunpack.c.l.b16 %v331
    %v364 = vunpack.c.l.b16 %v332
    %v365 = vunpack.c.l.b16 %v333
    %v366 = vunpack.c.l.b16 %v334
    %v367 = vunpack.c.l.b16 %v335
    %v368 = vunpack.c.l.b16 %v336
    %v369 = vunpack.c.l.b16 %v337
    %v370 = vunpack.c.l.b16 %v338
    %v371 = vunpack.c.l.b16 %v339
    %v372 = vpack.c.b16 %v357, %v356
    %v373 = vpack.c.b16 %v359, %v358
    %v374 = vpack.c.b16 %v361, %v360
    %v375 = vpack.c.b16 %v363, %v362
    %v376 = vpack.c.b16 %v365, %v364
    %v377 = vpack.c.b16 %v367, %v366
    %v378 = vpack.c.b16 %v369, %v368
    %v379 = vpack.c.b16 %v371, %v370
    %388 = vmatprep.subr.bf16.mxu0 0
    %389 = vmatpush1.bf16.msra.mxu0 %v379
    %390 = vmatprep.subr.bf16.mxu0 0
    %391 = vmatpush1.bf16.msra.mxu0 %v378
    %392 = vmatprep.subr.bf16.mxu0 0
    %393 = vmatpush1.bf16.msra.mxu0 %v377
    %394 = vmatprep.subr.bf16.mxu0 0
    %395 = vmatpush1.bf16.msra.mxu0 %v376
    %396 = vmatprep.subr.bf16.mxu0 0
    %397 = vmatpush1.bf16.msra.mxu0 %v375
    %398 = vmatprep.subr.bf16.mxu0 0
    %399 = vmatpush1.bf16.msra.mxu0 %v374
    %400 = vmatprep.subr.bf16.mxu0 0
    %401 = vmatpush1.bf16.msra.mxu0 %v373
    %402 = vmatprep.subr.bf16.mxu0 0
    %403 = vmatpush1.bf16.msra.mxu0 %v372
    %404 = vmatprep.subr.bf16.mxu0 0
    %405 = vmatpush2.bf16.msra.mxu0 0
    %406 = vmatprep.subr.bf16.mxu0 0
    %407 = vmatpush2.bf16.msra.mxu0 0
    %408 = vmatprep.subr.bf16.mxu0 0
    %409 = vmatpush2.bf16.msra.mxu0 0
    %410 = vmatprep.subr.bf16.mxu0 0
    %411 = vmatpush2.bf16.msra.mxu0 0
    %412 = vmatprep.subr.bf16.mxu0 0
    %413 = vmatpush2.bf16.msra.mxu0 0
    %414 = vmatprep.subr.bf16.mxu0 0
    %415 = vmatpush2.bf16.msra.mxu0 0
    %416 = vmatprep.subr.bf16.mxu0 0
    %417 = vmatpush2.bf16.msra.mxu0 0
    %418 = vmatprep.subr.bf16.mxu0 0
    %419 = vmatpush2.bf16.msra.mxu0 0
    %420 = vmatprep.mubr.bf16.mxu0 0
    %421 = vmatmul.mubr.bf16.gmra.mxu0 %v323
    %v422 = vpop.f32.mrf.mxu0
    %v423 = vadd.f32 0.0, %v422
    %v424 = vpop.f32.mrf.mxu0
    %v425 = vpop.f32.mrf.mxu0
    %v426 = vpop.f32.mrf.mxu0
    %427 = vdwg.mxu0
    %vm428 = vcmask 31744
    %429 = vst.msk [vmem:[%s8] sm:$0xff] %vm428, %v423
    // Predicated region
    $region38: #{tpu_custom_call.1} parent=1 // pred_check
      _
    $region39: #{tpu_custom_call.1} parent=1 // pred_check_branch
      %431 = sbr.rel (0) target = $region41
    $region40: #{tpu_custom_call.1} parent=1 // pred_region
      _
    $region41: #{tpu_custom_call.1} parent=1 // pred_fallthru
      _
    // Predicated region
    $region42: #{tpu_custom_call.1} parent=1 // pred_check
      _
    $region43: #{tpu_custom_call.1} parent=1 // pred_check_branch
      %433 = sbr.rel (0) target = $region45
    $region44: #{tpu_custom_call.1} parent=1 // pred_region
      _
    $region45: #{tpu_custom_call.1} parent=1 // pred_fallthru
      _
    %434 = vsyncpa [#allocation3], 1

</llo_original>
